<compile_context>
chip_gen: v6e
topology: v6e:2x2x1
jax: 0.10.0
libtpu: 0.0.40
codegen_flags: <defaults>
</compile_context>

<pallas_src>
import jax
import jax.numpy as jnp
from jax.experimental import pallas as pl
from jax.experimental.pallas import tpu as pltpu


# ----------------------------- padding helpers ------------------------------
def _ru(x, m):
    return ((x + m - 1) // m) * m


def _pad_to(x, rows, cols):
    return jnp.pad(x, ((0, rows - x.shape[0]), (0, cols - x.shape[1])))


# ------------------------------ Pallas kernel --------------------------------
def _fused_head_kernel(x_ref, lab_ref, cls_ref, w6_ref, b6_ref, w7_ref, b7_ref,
                       w1_ref, b1_ref, w2_ref, b2_ref,
                       x_out_ref, feat_ref, logit_ref):
    """fc6 -> relu -> fc7 -> relu -> [packed cls_embed concat] -> attr1 -> relu -> attr2.

    All matmuls take bf16 inputs and accumulate in f32 on the MXU; bias adds
    and ReLUs happen in f32 on the VPU.  The class-embedding row select is an
    in-kernel one-hot(label) @ packed-table matmul; the packed table already
    holds the embedding in columns [REP : REP+EMB) of the KP-wide block, so the
    concat([fc7_out, embed]) becomes a single add.
    """
    tn = x_ref.shape[0]
    ncpad = cls_ref.shape[0]
    rpad = x_out_ref.shape[1]

    h6 = jnp.dot(x_ref[...], w6_ref[...], preferred_element_type=jnp.float32)
    h6 = jnp.maximum(h6 + b6_ref[...], 0.0)

    h7 = jnp.dot(h6.astype(jnp.bfloat16), w7_ref[...],
                 preferred_element_type=jnp.float32)
    h7 = jnp.maximum(h7 + b7_ref[...], 0.0)          # padding cols stay 0

    # fc7 features: write back only the real REP columns, in bf16.
    x_out_ref[...] = h7[:, :rpad].astype(jnp.bfloat16)

    # In-kernel class-embedding select: one-hot(labels) @ packed table (MXU).
    lab = lab_ref[...]                                           # (tn, 1) i32
    ids = jax.lax.broadcasted_iota(jnp.int32, (tn, ncpad), 1)
    onehot = (lab == ids).astype(jnp.bfloat16)                   # (tn, ncpad)
    e = jnp.dot(onehot, cls_ref[...], preferred_element_type=jnp.float32)

    # Packed concat([h7, e]): h7's columns [REP:KP) are exactly 0 (zero weight/
    # bias padding and finite h6) and e's columns [0:REP) are 0, so one add
    # reproduces the concatenation.  NOTE: requires finite h6 (no Inf/NaN).
    xe = (h7 + e).astype(jnp.bfloat16)

    h1 = jnp.dot(xe, w1_ref[...], preferred_element_type=jnp.float32)
    h1 = jnp.maximum(h1 + b1_ref[...], 0.0)
    feat_ref[...] = h1.astype(jnp.bfloat16)

    logit_ref[...] = (
        jnp.dot(h1.astype(jnp.bfloat16), w2_ref[...],
                preferred_element_type=jnp.float32) + b2_ref[...])


# ------------------------- one-time parameter prep ---------------------------
def prepare_params(params, align=128):
    """Pad / pack / cast weights once (bf16 for MXU, f32 biases).

    align=128 is right for v5e and these toy sizes; use align=256 for
    production REP/HID on v6e/v7x (2x256x256 MXU).
    """
    flat_in, rep = params["fc6_w"].shape
    ncls, emb = params["cls_embed"].shape
    hid = params["attr_w1_x"].shape[1]
    nat = params["attr_w2"].shape[1]

    kpad = _ru(flat_in, align)
    rpad = _ru(rep, align)
    kp = _ru(rep + emb, align)      # packed width of [fc7_out | cls_embed]
    hpad = _ru(hid, align)
    apad = _ru(nat, align)
    ncpad = _ru(ncls, 128)          # one-hot contraction width
    bf = jnp.bfloat16

    # stacked first predictor layer: rows [0:rep) = W1_x, rows [rep:rep+emb) = W1_e
    w1_packed = jnp.zeros((kp, hpad), jnp.float32)
    w1_packed = w1_packed.at[:rep, :hid].set(params["attr_w1_x"])
    w1_packed = w1_packed.at[rep:rep + emb, :hid].set(params["attr_w1_e"])

    # embedding table pre-shifted into columns [rep : rep+emb), bf16, resident
    cls_packed = jnp.zeros((ncpad, kp), jnp.float32)
    cls_packed = cls_packed.at[:ncls, rep:rep + emb].set(params["cls_embed"])

    return dict(
        dims=dict(flat_in=flat_in, rep=rep, emb=emb, hid=hid, nat=nat,
                  ncls=ncls, kpad=kpad, rpad=rpad, kp=kp, hpad=hpad,
                  apad=apad, ncpad=ncpad),
        w6=_pad_to(params["fc6_w"], kpad, rpad).astype(bf),
        b6=_pad_to(params["fc6_b"].reshape(1, -1), 1, rpad),
        w7=_pad_to(params["fc7_w"], rpad, kp).astype(bf),
        b7=_pad_to(params["fc7_b"].reshape(1, -1), 1, kp),
        w1=w1_packed.astype(bf),
        b1=_pad_to(params["attr_b1"].reshape(1, -1), 1, hpad),
        w2=_pad_to(params["attr_w2"], hpad, apad).astype(bf),
        b2=_pad_to(params["attr_b2"].reshape(1, -1), 1, apad),
        cls_tab=cls_packed.astype(bf),
    )


# ------------------------------ fused wrapper ---------------------------------
def pallas_fused_head(x_flat_bf16, labels, prepped):
    d = prepped["dims"]
    kpad, rpad, kp = d["kpad"], d["rpad"], d["kp"]
    hpad, apad, ncpad = d["hpad"], d["apad"], d["ncpad"]

    n = x_flat_bf16.shape[0]
    if n == 0:   # empty-proposal guard (module returns early upstream)
        return (jnp.zeros((0, d["rep"]), jnp.bfloat16),
                jnp.zeros((0, d["nat"]), jnp.float32),
                jnp.zeros((0, d["hid"]), jnp.bfloat16))

    # Box tiling: fat tiles (<=512 rows) amortize per-grid-step overhead, but
    # keep >=2 tiles once n > 32 so v7x's two TensorCores both get work.
    if n > 32:
        tn = min(512, _ru(-(-n // 2), 16))
    else:
        tn = _ru(n, 16)                       # 16-row min for bf16 sublanes
    npad = _ru(n, tn)
    grid_n = npad // tn

    xp = _pad_to(x_flat_bf16, npad, kpad)                          # bf16 pad only
    lab = jnp.pad(labels.astype(jnp.int32), (0, npad - n)).reshape(npad, 1)

    flops = 2 * npad * (kpad * rpad + rpad * kp + ncpad * kp
                        + kp * hpad + hpad * apad)
    bytes_accessed = (
        npad * (kpad * 2 + 4)                                      # x (bf16) + labels
        + (kpad * rpad + rpad * kp + kp * hpad + hpad * apad + ncpad * kp) * 2
        + (rpad + kp + hpad + apad) * 4                            # biases (f32)
        + npad * (rpad * 2 + hpad * 2 + apad * 4))                 # outputs

    x_out, feat, logits = pl.pallas_call(
        _fused_head_kernel,
        grid=(grid_n,),
        in_specs=[
            pl.BlockSpec((tn, kpad), lambda i: (i, 0)),    # pooled activations (bf16)
            pl.BlockSpec((tn, 1), lambda i: (i, 0)),       # labels (int32)
            pl.BlockSpec((ncpad, kp), lambda i: (0, 0)),   # packed cls table (resident)
            pl.BlockSpec((kpad, rpad), lambda i: (0, 0)),  # fc6 W (resident)
            pl.BlockSpec((1, rpad), lambda i: (0, 0)),
            pl.BlockSpec((rpad, kp), lambda i: (0, 0)),    # fc7 W
            pl.BlockSpec((1, kp), lambda i: (0, 0)),
            pl.BlockSpec((kp, hpad), lambda i: (0, 0)),    # stacked attr W1
            pl.BlockSpec((1, hpad), lambda i: (0, 0)),
            pl.BlockSpec((hpad, apad), lambda i: (0, 0)),  # attr W2
            pl.BlockSpec((1, apad), lambda i: (0, 0)),
        ],
        out_specs=(
            pl.BlockSpec((tn, rpad), lambda i: (i, 0)),    # fc7 features (bf16)
            pl.BlockSpec((tn, hpad), lambda i: (i, 0)),    # attr features (bf16)
            pl.BlockSpec((tn, apad), lambda i: (i, 0)),    # attr logits (f32)
        ),
        out_shape=(
            jax.ShapeDtypeStruct((npad, rpad), jnp.bfloat16),
            jax.ShapeDtypeStruct((npad, hpad), jnp.bfloat16),
            jax.ShapeDtypeStruct((npad, apad), jnp.float32),
        ),
        compiler_params=pltpu.CompilerParams(
            dimension_semantics=("parallel",),
            # TODO(synk): raise toward ~96 MiB (v5e/v6e) for production fc6
            # resident weights; keep <= ~48 MiB of resident slabs on v7x.
            vmem_limit_bytes=32 * 1024 * 1024),
        cost_estimate=pl.CostEstimate(flops=flops, transcendentals=0,
                                      bytes_accessed=bytes_accessed),
    )(xp, lab, prepped["cls_tab"], prepped["w6"], prepped["b6"],
      prepped["w7"], prepped["b7"], prepped["w1"], prepped["b1"],
      prepped["w2"], prepped["b2"])

    return (x_out[:n, :d["rep"]],
            logits[:n, :d["nat"]],
            feat[:n, :d["hid"]])


# --------------------------- JAX glue: ROIAlign ------------------------------
def roi_align(feat, boxes, box_img_idx, resolution, spatial_scale):
    """Single-level ROIAlign, sampling_ratio=1 (one bilinear sample per bin).

    feat: (B, C, H, W) NCHW;  boxes: (N, 4) xyxy in image coords;
    box_img_idx: (N,) int32;  returns (N, C, P, P) float32.
    """
    _, _, H, W = feat.shape
    scaled = boxes.astype(jnp.float32) * spatial_scale
    x1, y1, x2, y2 = scaled[:, 0], scaled[:, 1], scaled[:, 2], scaled[:, 3]
    roi_w = jnp.maximum(x2 - x1, 1.0)
    roi_h = jnp.maximum(y2 - y1, 1.0)
    bin_w = roi_w / resolution
    bin_h = roi_h / resolution
    centers = jnp.arange(resolution, dtype=jnp.float32) + 0.5
    sx = jnp.clip(x1[:, None] + centers[None, :] * bin_w[:, None], 0.0, W - 1.0)
    sy = jnp.clip(y1[:, None] + centers[None, :] * bin_h[:, None], 0.0, H - 1.0)

    def sample_one(b_idx, ys, xs):
        img = feat[b_idx]                          # (C, H, W)
        y0f = jnp.floor(ys)
        x0f = jnp.floor(xs)
        wy = (ys - y0f)[None, :, None]
        wx = (xs - x0f)[None, None, :]
        y0 = y0f.astype(jnp.int32)
        x0 = x0f.astype(jnp.int32)
        y1i = jnp.minimum(y0 + 1, H - 1)
        x1i = jnp.minimum(x0 + 1, W - 1)

        def gather(yi, xi):
            return img[:, yi[:, None], xi[None, :]]   # (C, P, P)

        v00, v01 = gather(y0, x0), gather(y0, x1i)
        v10, v11 = gather(y1i, x0), gather(y1i, x1i)
        return (v00 * (1 - wy) * (1 - wx) + v01 * (1 - wy) * wx +
                v10 * wy * (1 - wx) + v11 * wy * wx)

    return jax.vmap(sample_one)(box_img_idx, sy, sx)


# ------------------------ module forward (inference) -------------------------
def roi_attribute_head_forward(features, boxes, box_img_idx, labels, prepped, cfg):
    # feature_extractor: ROIAlign pooling (JAX glue) + fused fc6/fc7/attr MLP.
    pooled = roi_align(features, boxes, box_img_idx,
                       cfg["resolution"], cfg["spatial_scale"])
    n = pooled.shape[0]
    # cast to bf16 here so the cast fuses with pooling instead of being a
    # separate full HBM pass in the kernel wrapper.
    x_flat = pooled.reshape(n, -1).astype(jnp.bfloat16)
    # predictor class-embedding select happens in-kernel from `labels`.
    x, attr_logits, attr_feat = pallas_fused_head(x_flat, labels, prepped)
    return x, attr_logits, attr_feat


# ------------------------------- reference -----------------------------------
def _reference(features, boxes, box_img_idx, labels, params, cfg):
    """Pure-JAX, bf16-matched reference (same cast points as the kernel)."""
    bf = jnp.bfloat16
    pooled = roi_align(features, boxes, box_img_idx,
                       cfg["resolution"], cfg["spatial_scale"])
    x = pooled.reshape(pooled.shape[0], -1)
    h6 = jax.nn.relu(
        jnp.dot(x.astype(bf), params["fc6_w"].astype(bf),
                preferred_element_type=jnp.float32) + params["fc6_b"])
    h7 = jax.nn.relu(
        jnp.dot(h6.astype(bf), params["fc7_w"].astype(bf),
                preferred_element_type=jnp.float32) + params["fc7_b"])
    e = params["cls_embed"][labels]
    xe = jnp.concatenate([h7, e], axis=1)
    w1 = jnp.concatenate([params["attr_w1_x"], params["attr_w1_e"]], axis=0)
    h1 = jax.nn.relu(
        jnp.dot(xe.astype(bf), w1.astype(bf),
                preferred_element_type=jnp.float32) + params["attr_b1"])
    logits = (jnp.dot(h1.astype(bf), params["attr_w2"].astype(bf),
                      preferred_element_type=jnp.float32) + params["attr_b2"])
    return h7, logits, h1


# ---------------------------------- main --------------------------------------
if __name__ == "__main__":
    key = jax.random.PRNGKey(0)

    # small synthetic config (cfg.MODEL.ROI_ATTRIBUTE_HEAD.*)
    B, C, H, W = 2, 16, 16, 16          # feature maps from box_head (NCHW)
    IMG_SIZE = 64
    cfg = dict(resolution=4, spatial_scale=H / IMG_SIZE)   # pooler
    REP = 64                            # MLP representation size
    NUM_CLASSES = 10
    EMB = 32                            # class-embedding dim
    ATTR_HID = 64                       # attr_linear1 out
    NUM_ATTR = 16                       # number of attribute classes

    keys = jax.random.split(key, 12)
    flat_in = C * cfg["resolution"] * cfg["resolution"]
    params = dict(
        fc6_w=jax.random.normal(keys[0], (flat_in, REP), jnp.float32) / jnp.sqrt(flat_in),
        fc6_b=jax.random.normal(keys[1], (REP,), jnp.float32) * 0.01,
        fc7_w=jax.random.normal(keys[2], (REP, REP), jnp.float32) / jnp.sqrt(REP),
        fc7_b=jax.random.normal(keys[3], (REP,), jnp.float32) * 0.01,
        cls_embed=jax.random.normal(keys[4], (NUM_CLASSES, EMB), jnp.float32),
        attr_w1_x=jax.random.normal(keys[5], (REP, ATTR_HID), jnp.float32) / jnp.sqrt(REP + EMB),
        attr_w1_e=jax.random.normal(keys[6], (EMB, ATTR_HID), jnp.float32) / jnp.sqrt(REP + EMB),
        attr_b1=jax.random.normal(keys[7], (ATTR_HID,), jnp.float32) * 0.01,
        attr_w2=jax.random.normal(keys[8], (ATTR_HID, NUM_ATTR), jnp.float32) / jnp.sqrt(ATTR_HID),
        attr_b2=jax.random.normal(keys[9], (NUM_ATTR,), jnp.float32) * 0.01,
    )

    # one-time weight pad / pack / bf16 cast
    prepped = prepare_params(params)

    # inputs: feature maps + proposals (boxes, per-box image index, labels)
    features = jax.random.normal(keys[10], (B, C, H, W), jnp.float32)
    num_dets = [3, 5]                   # boxes per image
    N = sum(num_dets)
    bk1, bk2, bk3 = jax.random.split(keys[11], 3)
    p1 = jax.random.uniform(bk1, (N, 2), minval=0.0, maxval=IMG_SIZE - 8.0)
    wh = jax.random.uniform(bk2, (N, 2), minval=4.0, maxval=24.0)
    boxes = jnp.concatenate([p1, jnp.minimum(p1 + wh, IMG_SIZE - 1.0)], axis=1)
    box_img_idx = jnp.asarray([0] * num_dets[0] + [1] * num_dets[1], jnp.int32)
    labels = jax.random.randint(bk3, (N,), 0, NUM_CLASSES, jnp.int32)

    x, attr_logits, attr_feat = roi_attribute_head_forward(
        features, boxes, box_img_idx, labels, prepped, cfg)
    jax.block_until_ready((x, attr_logits, attr_feat))

    # correctness check vs. bf16-matched pure-JAX reference
    x_ref, logits_ref, feat_ref = _reference(
        features, boxes, box_img_idx, labels, params, cfg)
    assert x.shape == (N, REP) and attr_logits.shape == (N, NUM_ATTR)
    assert attr_feat.shape == (N, ATTR_HID)
    assert x.dtype == jnp.bfloat16 and attr_feat.dtype == jnp.bfloat16
    assert jnp.allclose(x.astype(jnp.float32), x_ref, atol=2e-2, rtol=2e-2)
    assert jnp.allclose(attr_feat.astype(jnp.float32), feat_ref, atol=2e-2, rtol=2e-2)
    assert jnp.allclose(attr_logits, logits_ref, atol=2e-2, rtol=2e-2)

    print("KERNEL_OK")
</pallas_src>

<mosaic_0001>
module attributes {stable_mosaic.version = 11 : i64} {
  func.func @_fused_head_kernel(%arg0: i32, %arg1: memref<16x256xbf16, #tpu.memory_space<vmem>>, %arg2: memref<16x1xi32, #tpu.memory_space<vmem>>, %arg3: memref<128x128xbf16, #tpu.memory_space<vmem>>, %arg4: memref<256x128xbf16, #tpu.memory_space<vmem>>, %arg5: memref<1x128xf32, #tpu.memory_space<vmem>>, %arg6: memref<128x128xbf16, #tpu.memory_space<vmem>>, %arg7: memref<1x128xf32, #tpu.memory_space<vmem>>, %arg8: memref<128x128xbf16, #tpu.memory_space<vmem>>, %arg9: memref<1x128xf32, #tpu.memory_space<vmem>>, %arg10: memref<128x128xbf16, #tpu.memory_space<vmem>>, %arg11: memref<1x128xf32, #tpu.memory_space<vmem>>, %arg12: memref<16x128xbf16, #tpu.memory_space<vmem>>, %arg13: memref<16x128xbf16, #tpu.memory_space<vmem>>, %arg14: memref<16x128xf32, #tpu.memory_space<vmem>>) attributes {dimension_semantics = [#tpu.dimension_semantics<parallel>], iteration_bounds = array<i64: 1>, scalar_prefetch = 0 : i64, scratch_operands = 0 : i64, tpu.core_type = #tpu.core_type<tc>, window_params = [{transform_indices = @transform_0, window_bounds = array<i64: 16, 256>}, {transform_indices = @transform_1, window_bounds = array<i64: 16, 1>}, {pipeline_mode = #tpu.pipeline_mode<synchronous>, transform_indices = @transform_2, window_bounds = array<i64: 128, 128>}, {pipeline_mode = #tpu.pipeline_mode<synchronous>, transform_indices = @transform_3, window_bounds = array<i64: 256, 128>}, {pipeline_mode = #tpu.pipeline_mode<synchronous>, transform_indices = @transform_4, window_bounds = array<i64: 1, 128>}, {pipeline_mode = #tpu.pipeline_mode<synchronous>, transform_indices = @transform_5, window_bounds = array<i64: 128, 128>}, {pipeline_mode = #tpu.pipeline_mode<synchronous>, transform_indices = @transform_6, window_bounds = array<i64: 1, 128>}, {pipeline_mode = #tpu.pipeline_mode<synchronous>, transform_indices = @transform_7, window_bounds = array<i64: 128, 128>}, {pipeline_mode = #tpu.pipeline_mode<synchronous>, transform_indices = @transform_8, window_bounds = array<i64: 1, 128>}, {pipeline_mode = #tpu.pipeline_mode<synchronous>, transform_indices = @transform_9, window_bounds = array<i64: 128, 128>}, {pipeline_mode = #tpu.pipeline_mode<synchronous>, transform_indices = @transform_10, window_bounds = array<i64: 1, 128>}, {transform_indices = @transform_11, window_bounds = array<i64: 16, 128>}, {transform_indices = @transform_12, window_bounds = array<i64: 16, 128>}, {transform_indices = @transform_13, window_bounds = array<i64: 16, 128>}]} {
    %c0 = arith.constant 0 : index
    %c0_0 = arith.constant 0 : index
    %0 = vector.load %arg1[%c0, %c0_0] : memref<16x256xbf16, #tpu.memory_space<vmem>>, vector<16x256xbf16>
    %c0_1 = arith.constant 0 : index
    %c0_2 = arith.constant 0 : index
    %1 = vector.load %arg4[%c0_1, %c0_2] : memref<256x128xbf16, #tpu.memory_space<vmem>>, vector<256x128xbf16>
    %cst = arith.constant dense<0.000000e+00> : vector<16x128xf32>
    %2 = tpu.matmul %0, %1, %cst {dimension_numbers = #tpu.dot_dimension_numbers<[1], [0], [0], [1], [0, 0, 1, 1], [], []>} : vector<16x256xbf16>, vector<256x128xbf16>, vector<16x128xf32> -> vector<16x128xf32>
    %c0_3 = arith.constant 0 : index
    %c0_4 = arith.constant 0 : index
    %3 = vector.load %arg5[%c0_3, %c0_4] : memref<1x128xf32, #tpu.memory_space<vmem>>, vector<1x128xf32>
    %4 = vector.broadcast %3 : vector<1x128xf32> to vector<16x128xf32>
    %5 = arith.addf %2, %4 : vector<16x128xf32>
    %cst_5 = arith.constant 0.000000e+00 : f32
    %6 = vector.broadcast %cst_5 : f32 to vector<16x128xf32>
    %7 = arith.maximumf %5, %6 : vector<16x128xf32>
    %8 = arith.truncf %7 : vector<16x128xf32> to vector<16x128xbf16>
    %c0_6 = arith.constant 0 : index
    %c0_7 = arith.constant 0 : index
    %9 = vector.load %arg6[%c0_6, %c0_7] : memref<128x128xbf16, #tpu.memory_space<vmem>>, vector<128x128xbf16>
    %cst_8 = arith.constant dense<0.000000e+00> : vector<16x128xf32>
    %10 = tpu.matmul %8, %9, %cst_8 {dimension_numbers = #tpu.dot_dimension_numbers<[1], [0], [0], [1], [0, 0, 1, 1], [], []>} : vector<16x128xbf16>, vector<128x128xbf16>, vector<16x128xf32> -> vector<16x128xf32>
    %c0_9 = arith.constant 0 : index
    %c0_10 = arith.constant 0 : index
    %11 = vector.load %arg7[%c0_9, %c0_10] : memref<1x128xf32, #tpu.memory_space<vmem>>, vector<1x128xf32>
    %12 = vector.broadcast %11 : vector<1x128xf32> to vector<16x128xf32>
    %13 = arith.addf %10, %12 : vector<16x128xf32>
    %cst_11 = arith.constant 0.000000e+00 : f32
    %14 = vector.broadcast %cst_11 : f32 to vector<16x128xf32>
    %15 = arith.maximumf %13, %14 : vector<16x128xf32>
    %16 = arith.truncf %15 : vector<16x128xf32> to vector<16x128xbf16>
    %c0_12 = arith.constant 0 : index
    %c0_13 = arith.constant 0 : index
    %17 = vector.load %arg12[%c0_12, %c0_13] : memref<16x128xbf16, #tpu.memory_space<vmem>>, vector<16x128xbf16>
    tpu.vector_store %arg12[%c0_12, %c0_13], %16 {strides = array<i32>} : memref<16x128xbf16, #tpu.memory_space<vmem>>, vector<16x128xbf16>,
    %c0_14 = arith.constant 0 : index
    %c0_15 = arith.constant 0 : index
    %18 = vector.load %arg2[%c0_14, %c0_15] : memref<16x1xi32, #tpu.memory_space<vmem>>, vector<16x1xi32>
    %19 = tpu.iota {dimensions = array<i32: 1>} : vector<16x128xi32>
    %20 = vector.broadcast %18 : vector<16x1xi32> to vector<16x128xi32>
    %21 = arith.cmpi eq, %20, %19 : vector<16x128xi32>
    %22 = arith.extui %21 : vector<16x128xi1> to vector<16x128xi32>
    %23 = arith.sitofp %22 : vector<16x128xi32> to vector<16x128xf32>
    %24 = arith.truncf %23 : vector<16x128xf32> to vector<16x128xbf16>
    %c0_16 = arith.constant 0 : index
    %c0_17 = arith.constant 0 : index
    %25 = vector.load %arg3[%c0_16, %c0_17] : memref<128x128xbf16, #tpu.memory_space<vmem>>, vector<128x128xbf16>
    %cst_18 = arith.constant dense<0.000000e+00> : vector<16x128xf32>
    %26 = tpu.matmul %24, %25, %cst_18 {dimension_numbers = #tpu.dot_dimension_numbers<[1], [0], [0], [1], [0, 0, 1, 1], [], []>} : vector<16x128xbf16>, vector<128x128xbf16>, vector<16x128xf32> -> vector<16x128xf32>
    %27 = arith.addf %15, %26 : vector<16x128xf32>
    %28 = arith.truncf %27 : vector<16x128xf32> to vector<16x128xbf16>
    %c0_19 = arith.constant 0 : index
    %c0_20 = arith.constant 0 : index
    %29 = vector.load %arg8[%c0_19, %c0_20] : memref<128x128xbf16, #tpu.memory_space<vmem>>, vector<128x128xbf16>
    %cst_21 = arith.constant dense<0.000000e+00> : vector<16x128xf32>
    %30 = tpu.matmul %28, %29, %cst_21 {dimension_numbers = #tpu.dot_dimension_numbers<[1], [0], [0], [1], [0, 0, 1, 1], [], []>} : vector<16x128xbf16>, vector<128x128xbf16>, vector<16x128xf32> -> vector<16x128xf32>
    %c0_22 = arith.constant 0 : index
    %c0_23 = arith.constant 0 : index
    %31 = vector.load %arg9[%c0_22, %c0_23] : memref<1x128xf32, #tpu.memory_space<vmem>>, vector<1x128xf32>
    %32 = vector.broadcast %31 : vector<1x128xf32> to vector<16x128xf32>
    %33 = arith.addf %30, %32 : vector<16x128xf32>
    %cst_24 = arith.constant 0.000000e+00 : f32
    %34 = vector.broadcast %cst_24 : f32 to vector<16x128xf32>
    %35 = arith.maximumf %33, %34 : vector<16x128xf32>
    %36 = arith.truncf %35 : vector<16x128xf32> to vector<16x128xbf16>
    %c0_25 = arith.constant 0 : index
    %c0_26 = arith.constant 0 : index
    %37 = vector.load %arg13[%c0_25, %c0_26] : memref<16x128xbf16, #tpu.memory_space<vmem>>, vector<16x128xbf16>
    tpu.vector_store %arg13[%c0_25, %c0_26], %36 {strides = array<i32>} : memref<16x128xbf16, #tpu.memory_space<vmem>>, vector<16x128xbf16>,
    %38 = arith.truncf %35 : vector<16x128xf32> to vector<16x128xbf16>
    %c0_27 = arith.constant 0 : index
    %c0_28 = arith.constant 0 : index
    %39 = vector.load %arg10[%c0_27, %c0_28] : memref<128x128xbf16, #tpu.memory_space<vmem>>, vector<128x128xbf16>
    %cst_29 = arith.constant dense<0.000000e+00> : vector<16x128xf32>
    %40 = tpu.matmul %38, %39, %cst_29 {dimension_numbers = #tpu.dot_dimension_numbers<[1], [0], [0], [1], [0, 0, 1, 1], [], []>} : vector<16x128xbf16>, vector<128x128xbf16>, vector<16x128xf32> -> vector<16x128xf32>
    %c0_30 = arith.constant 0 : index
    %c0_31 = arith.constant 0 : index
    %41 = vector.load %arg11[%c0_30, %c0_31] : memref<1x128xf32, #tpu.memory_space<vmem>>, vector<1x128xf32>
    %42 = vector.broadcast %41 : vector<1x128xf32> to vector<16x128xf32>
    %43 = arith.addf %40, %42 : vector<16x128xf32>
    %c0_32 = arith.constant 0 : index
    %c0_33 = arith.constant 0 : index
    %44 = vector.load %arg14[%c0_32, %c0_33] : memref<16x128xf32, #tpu.memory_space<vmem>>, vector<16x128xf32>
    tpu.vector_store %arg14[%c0_32, %c0_33], %43 {strides = array<i32>} : memref<16x128xf32, #tpu.memory_space<vmem>>, vector<16x128xf32>,
    return
  }
  func.func @transform_0(%arg0: i32) -> (i32, i32) {
    %c0_i32 = arith.constant 0 : i32
    %c0_i32_0 = arith.constant 0 : i32
    return %arg0, %c0_i32 : i32, i32
  }
  func.func @transform_1(%arg0: i32) -> (i32, i32) {
    %c0_i32 = arith.constant 0 : i32
    %c0_i32_0 = arith.constant 0 : i32
    return %arg0, %c0_i32 : i32, i32
  }
  func.func @transform_2(%arg0: i32) -> (i32, i32) {
    %c0_i32 = arith.constant 0 : i32
    %c0_i32_0 = arith.constant 0 : i32
    %c0_i32_1 = arith.constant 0 : i32
    return %c0_i32, %c0_i32_0 : i32, i32
  }
  func.func @transform_3(%arg0: i32) -> (i32, i32) {
    %c0_i32 = arith.constant 0 : i32
    %c0_i32_0 = arith.constant 0 : i32
    %c0_i32_1 = arith.constant 0 : i32
    return %c0_i32, %c0_i32_0 : i32, i32
  }
  func.func @transform_4(%arg0: i32) -> (i32, i32) {
    %c0_i32 = arith.constant 0 : i32
    %c0_i32_0 = arith.constant 0 : i32
    %c0_i32_1 = arith.constant 0 : i32
    return %c0_i32, %c0_i32_0 : i32, i32
  }
  func.func @transform_5(%arg0: i32) -> (i32, i32) {
    %c0_i32 = arith.constant 0 : i32
    %c0_i32_0 = arith.constant 0 : i32
    %c0_i32_1 = arith.constant 0 : i32
    return %c0_i32, %c0_i32_0 : i32, i32
  }
  func.func @transform_6(%arg0: i32) -> (i32, i32) {
    %c0_i32 = arith.constant 0 : i32
    %c0_i32_0 = arith.constant 0 : i32
    %c0_i32_1 = arith.constant 0 : i32
    return %c0_i32, %c0_i32_0 : i32, i32
  }
  func.func @transform_7(%arg0: i32) -> (i32, i32) {
    %c0_i32 = arith.constant 0 : i32
    %c0_i32_0 = arith.constant 0 : i32
    %c0_i32_1 = arith.constant 0 : i32
    return %c0_i32, %c0_i32_0 : i32, i32
  }
  func.func @transform_8(%arg0: i32) -> (i32, i32) {
    %c0_i32 = arith.constant 0 : i32
    %c0_i32_0 = arith.constant 0 : i32
    %c0_i32_1 = arith.constant 0 : i32
    return %c0_i32, %c0_i32_0 : i32, i32
  }
  func.func @transform_9(%arg0: i32) -> (i32, i32) {
    %c0_i32 = arith.constant 0 : i32
    %c0_i32_0 = arith.constant 0 : i32
    %c0_i32_1 = arith.constant 0 : i32
    return %c0_i32, %c0_i32_0 : i32, i32
  }
  func.func @transform_10(%arg0: i32) -> (i32, i32) {
    %c0_i32 = arith.constant 0 : i32
    %c0_i32_0 = arith.constant 0 : i32
    %c0_i32_1 = arith.constant 0 : i32
    return %c0_i32, %c0_i32_0 : i32, i32
  }
  func.func @transform_11(%arg0: i32) -> (i32, i32) {
    %c0_i32 = arith.constant 0 : i32
    %c0_i32_0 = arith.constant 0 : i32
    return %arg0, %c0_i32 : i32, i32
  }
  func.func @transform_12(%arg0: i32) -> (i32, i32) {
    %c0_i32 = arith.constant 0 : i32
    %c0_i32_0 = arith.constant 0 : i32
    return %arg0, %c0_i32 : i32, i32
  }
  func.func @transform_13(%arg0: i32) -> (i32, i32) {
    %c0_i32 = arith.constant 0 : i32
    %c0_i32_0 = arith.constant 0 : i32
    return %arg0, %c0_i32 : i32, i32
  }
}

</mosaic_0001>

<llo_original>
// kernel: tpu_custom_call.1
$region0: #{tpu_custom_call.1}
  #allocation0 [shape = 'u32[]', space=smem, size = 0x4, offset = 0x4, fixed_abs, tag = 'smem constant byte address 0x4 - core index']
  #allocation1 [shape = 'u32[144,128]{1,0:T(1,128)}', space=vmem, size = 0x12000, scoped, tag = 'internal scratch']
  %s0 = inlined_call_operand.vmem [shape: bf16[16,256], index: 0, kind: input, shape index: {}]
  %s1 = inlined_call_operand.vmem [shape: s32[16,1], index: 1, kind: input, shape index: {}]
  %s2 = inlined_call_operand.hbm [shape: bf16[128,128], index: 2, kind: input, shape index: {}]
  %s3 = inlined_call_operand.hbm [shape: bf16[256,128], index: 3, kind: input, shape index: {}]
  %s4 = inlined_call_operand.vmem [shape: f32[1,128], index: 4, kind: input, shape index: {}]
  %s5 = inlined_call_operand.hbm [shape: bf16[128,128], index: 5, kind: input, shape index: {}]
  %s6 = inlined_call_operand.vmem [shape: f32[1,128], index: 6, kind: input, shape index: {}]
  %s7 = inlined_call_operand.hbm [shape: bf16[128,128], index: 7, kind: input, shape index: {}]
  %s8 = inlined_call_operand.vmem [shape: f32[1,128], index: 8, kind: input, shape index: {}]
  %s9 = inlined_call_operand.hbm [shape: bf16[128,128], index: 9, kind: input, shape index: {}]
  %s10 = inlined_call_operand.vmem [shape: f32[1,128], index: 10, kind: input, shape index: {}]
  %s11 = inlined_call_operand.hbm [shape: bf16[16,128], index: 11, kind: output, shape index: {0}]
  %s12 = inlined_call_operand.hbm [shape: bf16[16,128], index: 12, kind: output, shape index: {1}]
  %s13 = inlined_call_operand.hbm [shape: f32[16,128], index: 13, kind: output, shape index: {2}]
  %14 = xla_tuple %s11, %s12, %s13
  %s15 = sld [smem:[#allocation0]]
  $region90: #{tpu_custom_call.1} parent=0
    _
  %s17 = ssub.s32 1, %s15
  %s18 = scalar_select 0, %s17, %s15
  $region1: #{tpu_custom_call.1} parent=0
    #allocation2 [shape = 'u8[32768]{0}', space=vmem, size = 0x8000, scoped, tag = 'input window, operand 2, single buffered']
    #allocation3 [shape = 's32[1]{0}', space=sflag, size = 0x4, scoped, tag = 'scoped memory for tpu_custom_call.1']
    #allocation4 [shape = 's32[1]{0}', space=sflag, size = 0x4, scoped, tag = 'scoped memory for tpu_custom_call.1']
    #allocation5 [shape = 'u8[65536]{0}', space=vmem, size = 0x10000, scoped, tag = 'input window, operand 3, single buffered']
    #allocation6 [shape = 's32[1]{0}', space=sflag, size = 0x4, scoped, tag = 'scoped memory for tpu_custom_call.1']
    #allocation7 [shape = 'u8[32768]{0}', space=vmem, size = 0x8000, scoped, tag = 'input window, operand 5, single buffered']
    #allocation8 [shape = 'u8[32768]{0}', space=vmem, size = 0x8000, scoped, tag = 'input window, operand 7, single buffered']
    #allocation9 [shape = 's32[1]{0}', space=sflag, size = 0x4, scoped, tag = 'scoped memory for tpu_custom_call.1']
    #allocation10 [shape = 'u8[32768]{0}', space=vmem, size = 0x8000, scoped, tag = 'input window, operand 9, single buffered']
    #allocation11 [shape = 'u8[4096]{0}', space=vmem, size = 0x1000, scoped, tag = 'output window, operand 0, single buffered']
    #allocation12 [shape = 'u8[4096]{0}', space=vmem, size = 0x1000, scoped, tag = 'output window, operand 1, single buffered']
    #allocation13 [shape = 's32[1]{0}', space=sflag, size = 0x4, scoped, tag = 'scoped memory for tpu_custom_call.1']
    #allocation14 [shape = 'u8[8192]{0}', space=vmem, size = 0x2000, scoped, tag = 'output window, operand 2, single buffered']
    %19 = vsyncpa [#allocation3], 0
    %20 = vsyncpa [#allocation6], 0
    %21 = vsyncpa [#allocation9], 0
    %22 = vsyncpa [#allocation4], 0
    %23 = vsyncpa [#allocation13], 0
    // Predicated region
    $region2: #{tpu_custom_call.1} parent=1 // pred_check
      _
    $region3: #{tpu_custom_call.1} parent=1 // pred_check_branch
      %25 = sbr.rel (0) target = $region5
    $region4: #{tpu_custom_call.1} parent=1 // pred_region
      _
    $region5: #{tpu_custom_call.1} parent=1 // pred_fallthru
      _
    // Predicated region
    $region6: #{tpu_custom_call.1} parent=1 // pred_check
      _
    $region7: #{tpu_custom_call.1} parent=1 // pred_check_branch
      %27 = sbr.rel (0) target = $region9
    $region8: #{tpu_custom_call.1} parent=1 // pred_region
      _
    $region9: #{tpu_custom_call.1} parent=1 // pred_fallthru
      _
    // Predicated region
    $region10: #{tpu_custom_call.1} parent=1 // pred_check
      _
    $region11: #{tpu_custom_call.1} parent=1 // pred_check_branch
      %29 = sbr.rel (0) target = $region13
    $region12: #{tpu_custom_call.1} parent=1 // pred_region
      %s31 = ssub.s32 1024, 1024
      %32 = vsyncadd [#allocation3], %s31
      %s33 = sshll.u32 [#allocation2], 4
      %s34 = int_to_ptr.vmem [resolvable:$true] %s33
      %39 = dma.hbm_to_vmem [thread:$0]  %s2, 1024, %s34, [#allocation3], 64, 64, 4
    $region13: #{tpu_custom_call.1} parent=1 // pred_fallthru
      _
    // Predicated region
    $region14: #{tpu_custom_call.1} parent=1 // pred_check
      _
    $region15: #{tpu_custom_call.1} parent=1 // pred_check_branch
      %41 = sbr.rel (0) target = $region17
    $region16: #{tpu_custom_call.1} parent=1 // pred_region
      %s43 = ssub.s32 2048, 2048
      %44 = vsyncadd [#allocation6], %s43
      %s45 = sshll.u32 [#allocation5], 4
      %s46 = int_to_ptr.vmem [resolvable:$true] %s45
      %51 = dma.hbm_to_vmem [thread:$0]  %s3, 2048, %s46, [#allocation6], 64, 64, 4
    $region17: #{tpu_custom_call.1} parent=1 // pred_fallthru
      _
    // Predicated region
    $region18: #{tpu_custom_call.1} parent=1 // pred_check
      _
    $region19: #{tpu_custom_call.1} parent=1 // pred_check_branch
      %53 = sbr.rel (0) target = $region21
    $region20: #{tpu_custom_call.1} parent=1 // pred_region
      _
    $region21: #{tpu_custom_call.1} parent=1 // pred_fallthru
      _
    // Predicated region
    $region22: #{tpu_custom_call.1} parent=1 // pred_check
      _
    $region23: #{tpu_custom_call.1} parent=1 // pred_check_branch
      %55 = sbr.rel (0) target = $region25
    $region24: #{tpu_custom_call.1} parent=1 // pred_region
      %s57 = ssub.s32 1024, 1024
      %58 = vsyncadd [#allocation6], %s57
      %s59 = sshll.u32 [#allocation7], 4
      %s60 = int_to_ptr.vmem [resolvable:$true] %s59
      %65 = dma.hbm_to_vmem [thread:$0]  %s5, 1024, %s60, [#allocation6], 64, 64, 4
    $region25: #{tpu_custom_call.1} parent=1 // pred_fallthru
      _
    // Predicated region
    $region26: #{tpu_custom_call.1} parent=1 // pred_check
      _
    $region27: #{tpu_custom_call.1} parent=1 // pred_check_branch
      %67 = sbr.rel (0) target = $region29
    $region28: #{tpu_custom_call.1} parent=1 // pred_region
      _
    $region29: #{tpu_custom_call.1} parent=1 // pred_fallthru
      _
    // Predicated region
    $region30: #{tpu_custom_call.1} parent=1 // pred_check
      _
    $region31: #{tpu_custom_call.1} parent=1 // pred_check_branch
      %69 = sbr.rel (0) target = $region33
    $region32: #{tpu_custom_call.1} parent=1 // pred_region
      %s71 = ssub.s32 1024, 1024
      %72 = vsyncadd [#allocation9], %s71
      %s73 = sshll.u32 [#allocation8], 4
      %s74 = int_to_ptr.vmem [resolvable:$true] %s73
      %79 = dma.hbm_to_vmem [thread:$0]  %s7, 1024, %s74, [#allocation9], 64, 64, 4
    $region33: #{tpu_custom_call.1} parent=1 // pred_fallthru
      _
    // Predicated region
    $region34: #{tpu_custom_call.1} parent=1 // pred_check
      _
    $region35: #{tpu_custom_call.1} parent=1 // pred_check_branch
      %81 = sbr.rel (0) target = $region37
    $region36: #{tpu_custom_call.1} parent=1 // pred_region
      _
    $region37: #{tpu_custom_call.1} parent=1 // pred_fallthru
      _
    // Predicated region
    $region38: #{tpu_custom_call.1} parent=1 // pred_check
      _
    $region39: #{tpu_custom_call.1} parent=1 // pred_check_branch
      %83 = sbr.rel (0) target = $region41
    $region40: #{tpu_custom_call.1} parent=1 // pred_region
      %s85 = ssub.s32 1024, 1024
      %86 = vsyncadd [#allocation9], %s85
      %s87 = sshll.u32 [#allocation10], 4
      %s88 = int_to_ptr.vmem [resolvable:$true] %s87
      %93 = dma.hbm_to_vmem [thread:$0]  %s9, 1024, %s88, [#allocation9], 64, 64, 4
    $region41: #{tpu_custom_call.1} parent=1 // pred_fallthru
      _
    // Predicated region
    $region42: #{tpu_custom_call.1} parent=1 // pred_check
      _
    $region43: #{tpu_custom_call.1} parent=1 // pred_check_branch
      %95 = sbr.rel (0) target = $region45
    $region44: #{tpu_custom_call.1} parent=1 // pred_region
      _
    $region45: #{tpu_custom_call.1} parent=1 // pred_fallthru
      _
    // Predicated region
    $region46: #{tpu_custom_call.1} parent=1 // pred_check
      _
    $region47: #{tpu_custom_call.1} parent=1 // pred_check_branch
      %97 = sbr.rel (0) target = $region49
    $region48: #{tpu_custom_call.1} parent=1 // pred_region
      %98 = dma.done [#allocation3], 1024
    $region49: #{tpu_custom_call.1} parent=1 // pred_fallthru
      _
    // Predicated region
    $region50: #{tpu_custom_call.1} parent=1 // pred_check
      _
    $region51: #{tpu_custom_call.1} parent=1 // pred_check_branch
      %100 = sbr.rel (0) target = $region53
    $region52: #{tpu_custom_call.1} parent=1 // pred_region
      %101 = dma.done [#allocation6], 2048
    $region53: #{tpu_custom_call.1} parent=1 // pred_fallthru
      _
    // Predicated region
    $region54: #{tpu_custom_call.1} parent=1 // pred_check
      _
    $region55: #{tpu_custom_call.1} parent=1 // pred_check_branch
      %103 = sbr.rel (0) target = $region57
    $region56: #{tpu_custom_call.1} parent=1 // pred_region
      %104 = dma.done [#allocation6], 1024
    $region57: #{tpu_custom_call.1} parent=1 // pred_fallthru
      _
    // Predicated region
    $region58: #{tpu_custom_call.1} parent=1 // pred_check
      _
    $region59: #{tpu_custom_call.1} parent=1 // pred_check_branch
      %106 = sbr.rel (0) target = $region61
    $region60: #{tpu_custom_call.1} parent=1 // pred_region
      %107 = dma.done [#allocation9], 1024
    $region61: #{tpu_custom_call.1} parent=1 // pred_fallthru
      _
    // Predicated region
    $region62: #{tpu_custom_call.1} parent=1 // pred_check
      _
    $region63: #{tpu_custom_call.1} parent=1 // pred_check_branch
      %109 = sbr.rel (0) target = $region65
    $region64: #{tpu_custom_call.1} parent=1 // pred_region
      %110 = dma.done [#allocation9], 1024
    $region65: #{tpu_custom_call.1} parent=1 // pred_fallthru
      _
    %v112 = vld [vmem:[%s0] sm:$0xff]
    %v113 = vld [vmem:[%s0 + $0x8] sm:$0xff]
    %v114 = vld [vmem:[#allocation5] sm:$0xf]
    %v115 = vld [vmem:[#allocation5 + $0x4] sm:$0xf]
    %v116 = vld [vmem:[#allocation5 + $0x8] sm:$0xf]
    %v117 = vld [vmem:[#allocation5 + $0xc] sm:$0xf]
    %v118 = vld [vmem:[#allocation5 + $0x10] sm:$0xf]
    %v119 = vld [vmem:[#allocation5 + $0x14] sm:$0xf]
    %v120 = vld [vmem:[#allocation5 + $0x18] sm:$0xf]
    %v121 = vld [vmem:[#allocation5 + $0x1c] sm:$0xf]
    %v122 = vld [vmem:[#allocation5 + $0x20] sm:$0xf]
    %v123 = vld [vmem:[#allocation5 + $0x24] sm:$0xf]
    %v124 = vld [vmem:[#allocation5 + $0x28] sm:$0xf]
    %v125 = vld [vmem:[#allocation5 + $0x2c] sm:$0xf]
    %v126 = vld [vmem:[#allocation5 + $0x30] sm:$0xf]
    %v127 = vld [vmem:[#allocation5 + $0x34] sm:$0xf]
    %v128 = vld [vmem:[#allocation5 + $0x38] sm:$0xf]
    %v129 = vld [vmem:[#allocation5 + $0x3c] sm:$0xf]
    %v130 = vld [vmem:[#allocation5 + $0x40] sm:$0xf]
    %v131 = vld [vmem:[#allocation5 + $0x44] sm:$0xf]
    %v132 = vld [vmem:[#allocation5 + $0x48] sm:$0xf]
    %v133 = vld [vmem:[#allocation5 + $0x4c] sm:$0xf]
    %v134 = vld [vmem:[#allocation5 + $0x50] sm:$0xf]
    %v135 = vld [vmem:[#allocation5 + $0x54] sm:$0xf]
    %v136 = vld [vmem:[#allocation5 + $0x58] sm:$0xf]
    %v137 = vld [vmem:[#allocation5 + $0x5c] sm:$0xf]
    %v138 = vld [vmem:[#allocation5 + $0x60] sm:$0xf]
    %v139 = vld [vmem:[#allocation5 + $0x64] sm:$0xf]
    %v140 = vld [vmem:[#allocation5 + $0x68] sm:$0xf]
    %v141 = vld [vmem:[#allocation5 + $0x6c] sm:$0xf]
    %v142 = vld [vmem:[#allocation5 + $0x70] sm:$0xf]
    %v143 = vld [vmem:[#allocation5 + $0x74] sm:$0xf]
    %v144 = vld [vmem:[#allocation5 + $0x78] sm:$0xf]
    %v145 = vld [vmem:[#allocation5 + $0x7c] sm:$0xf]
    %v146 = vld [vmem:[%s4] sm:$0x1]
    %v148 = vlaneseq
    %v149 = vshrl.u32 %v148, 7
    %v150 = vsub.s32 0, %v149
    %v151 = vrot.slane %v146, %v150
    %v155 = vunpack.c.l.b16 %v112
    %v156 = vunpack.c.h.b16 %v112
    %v157 = vunpack.c.l.b16 %v113
    %v158 = vunpack.c.h.b16 %v113
    %v159 = vpack.c.b16 %v157, %v155
    %v160 = vpack.c.b16 %v158, %v156
    %v195 = vunpack.c.l.b16 %v114
    %v196 = vunpack.c.l.b16 %v115
    %v197 = vunpack.c.l.b16 %v116
    %v198 = vunpack.c.l.b16 %v117
    %v199 = vunpack.c.l.b16 %v118
    %v200 = vunpack.c.l.b16 %v119
    %v201 = vunpack.c.l.b16 %v120
    %v202 = vunpack.c.l.b16 %v121
    %v203 = vunpack.c.l.b16 %v122
    %v204 = vunpack.c.l.b16 %v123
    %v205 = vunpack.c.l.b16 %v124
    %v206 = vunpack.c.l.b16 %v125
    %v207 = vunpack.c.l.b16 %v126
    %v208 = vunpack.c.l.b16 %v127
    %v209 = vunpack.c.l.b16 %v128
    %v210 = vunpack.c.l.b16 %v129
    %v211 = vunpack.c.l.b16 %v130
    %v212 = vunpack.c.l.b16 %v131
    %v213 = vunpack.c.l.b16 %v132
    %v214 = vunpack.c.l.b16 %v133
    %v215 = vunpack.c.l.b16 %v134
    %v216 = vunpack.c.l.b16 %v135
    %v217 = vunpack.c.l.b16 %v136
    %v218 = vunpack.c.l.b16 %v137
    %v219 = vunpack.c.l.b16 %v138
    %v220 = vunpack.c.l.b16 %v139
    %v221 = vunpack.c.l.b16 %v140
    %v222 = vunpack.c.l.b16 %v141
    %v223 = vunpack.c.l.b16 %v142
    %v224 = vunpack.c.l.b16 %v143
    %v225 = vunpack.c.l.b16 %v144
    %v226 = vunpack.c.l.b16 %v145
    %v227 = vpack.c.b16 %v196, %v195
    %v228 = vpack.c.b16 %v198, %v197
    %v229 = vpack.c.b16 %v200, %v199
    %v230 = vpack.c.b16 %v202, %v201
    %v231 = vpack.c.b16 %v204, %v203
    %v232 = vpack.c.b16 %v206, %v205
    %v233 = vpack.c.b16 %v208, %v207
    %v234 = vpack.c.b16 %v210, %v209
    %v235 = vpack.c.b16 %v212, %v211
    %v236 = vpack.c.b16 %v214, %v213
    %v237 = vpack.c.b16 %v216, %v215
    %v238 = vpack.c.b16 %v218, %v217
    %v239 = vpack.c.b16 %v220, %v219
    %v240 = vpack.c.b16 %v222, %v221
    %v241 = vpack.c.b16 %v224, %v223
    %v242 = vpack.c.b16 %v226, %v225
    %259 = vmatprep.subr.bf16.mxu0 0
    %260 = vmatpush1.bf16.msra.mxu0 %v234
    %261 = vmatprep.subr.bf16.mxu0 0
    %262 = vmatpush1.bf16.msra.mxu0 %v233
    %263 = vmatprep.subr.bf16.mxu0 0
    %264 = vmatpush1.bf16.msra.mxu0 %v232
    %265 = vmatprep.subr.bf16.mxu0 0
    %266 = vmatpush1.bf16.msra.mxu0 %v231
    %267 = vmatprep.subr.bf16.mxu0 0
    %268 = vmatpush1.bf16.msra.mxu0 %v230
    %269 = vmatprep.subr.bf16.mxu0 0
    %270 = vmatpush1.bf16.msra.mxu0 %v229
    %271 = vmatprep.subr.bf16.mxu0 0
    %272 = vmatpush1.bf16.msra.mxu0 %v228
    %273 = vmatprep.subr.bf16.mxu0 0
    %274 = vmatpush1.bf16.msra.mxu0 %v227
    %275 = vmatprep.subr.bf16.mxu0 0
    %276 = vmatpush2.bf16.msra.mxu0 %v242
    %277 = vmatprep.subr.bf16.mxu0 0
    %278 = vmatpush2.bf16.msra.mxu0 %v241
    %279 = vmatprep.subr.bf16.mxu0 0
    %280 = vmatpush2.bf16.msra.mxu0 %v240
    %281 = vmatprep.subr.bf16.mxu0 0
    %282 = vmatpush2.bf16.msra.mxu0 %v239
    %283 = vmatprep.subr.bf16.mxu0 0
    %284 = vmatpush2.bf16.msra.mxu0 %v238
    %285 = vmatprep.subr.bf16.mxu0 0
    %286 = vmatpush2.bf16.msra.mxu0 %v237
    %287 = vmatprep.subr.bf16.mxu0 0
    %288 = vmatpush2.bf16.msra.mxu0 %v236
    %289 = vmatprep.subr.bf16.mxu0 0
    %290 = vmatpush2.bf16.msra.mxu0 %v235
    %291 = vmatprep.mubr.bf16.mxu0 %v160
    %292 = vmatmul.mubr.bf16.gmra.mxu0 %v159
    %v293 = vpop.f32.mrf.mxu0
    %v294 = vadd.f32 %v151, %v293
    %v295 = vpop.f32.mrf.mxu0
    %v296 = vpop.f32.mrf.mxu0
    %v297 = vadd.f32 %v151, %v296
    %v298 = vpop.f32.mrf.mxu0
    %299 = vdwg.mxu0
    %v300 = vmax.f32 %v294, 0.0
    %v301 = vmax.f32 %v297, 0.0
    %v302 = vpack.c.bf16 %v301, %v300
    %v303 = vld [vmem:[#allocation7] sm:$0xf]
    %v304 = vld [vmem:[#allocation7 + $0x4] sm:$0xf]
    %v305 = vld [vmem:[#allocation7 + $0x8] sm:$0xf]
    %v306 = vld [vmem:[#allocation7 + $0xc] sm:$0xf]
    %v307 = vld [vmem:[#allocation7 + $0x10] sm:$0xf]
    %v308 = vld [vmem:[#allocation7 + $0x14] sm:$0xf]
    %v309 = vld [vmem:[#allocation7 + $0x18] sm:$0xf]
    %v310 = vld [vmem:[#allocation7 + $0x1c] sm:$0xf]
    %v311 = vld [vmem:[#allocation7 + $0x20] sm:$0xf]
    %v312 = vld [vmem:[#allocation7 + $0x24] sm:$0xf]
    %v313 = vld [vmem:[#allocation7 + $0x28] sm:$0xf]
    %v314 = vld [vmem:[#allocation7 + $0x2c] sm:$0xf]
    %v315 = vld [vmem:[#allocation7 + $0x30] sm:$0xf]
    %v316 = vld [vmem:[#allocation7 + $0x34] sm:$0xf]
    %v317 = vld [vmem:[#allocation7 + $0x38] sm:$0xf]
    %v318 = vld [vmem:[#allocation7 + $0x3c] sm:$0xf]
    %v319 = vld [vmem:[%s6] sm:$0x1]
    %v321 = vlaneseq
    %v322 = vshrl.u32 %v321, 7
    %v323 = vsub.s32 0, %v322
    %v324 = vrot.slane %v319, %v323
    %v342 = vunpack.c.l.b16 %v303
    %v343 = vunpack.c.l.b16 %v304
    %v344 = vunpack.c.l.b16 %v305
    %v345 = vunpack.c.l.b16 %v306
    %v346 = vunpack.c.l.b16 %v307
    %v347 = vunpack.c.l.b16 %v308
    %v348 = vunpack.c.l.b16 %v309
    %v349 = vunpack.c.l.b16 %v310
    %v350 = vunpack.c.l.b16 %v311
    %v351 = vunpack.c.l.b16 %v312
    %v352 = vunpack.c.l.b16 %v313
    %v353 = vunpack.c.l.b16 %v314
    %v354 = vunpack.c.l.b16 %v315
    %v355 = vunpack.c.l.b16 %v316
    %v356 = vunpack.c.l.b16 %v317
    %v357 = vunpack.c.l.b16 %v318
    %v358 = vpack.c.b16 %v343, %v342
    %v359 = vpack.c.b16 %v345, %v344
    %v360 = vpack.c.b16 %v347, %v346
    %v361 = vpack.c.b16 %v349, %v348
    %v362 = vpack.c.b16 %v351, %v350
    %v363 = vpack.c.b16 %v353, %v352
    %v364 = vpack.c.b16 %v355, %v354
    %v365 = vpack.c.b16 %v357, %v356
    %374 = vmatprep.subr.bf16.mxu0 0
    %375 = vmatpush1.bf16.msra.mxu0 %v365
    %376 = vmatprep.subr.bf16.mxu0 0
    %377 = vmatpush1.bf16.msra.mxu0 %v364
    %378 = vmatprep.subr.bf16.mxu0 0
    %379 = vmatpush1.bf16.msra.mxu0 %v363
    %380 = vmatprep.subr.bf16.mxu0 0
    %381 = vmatpush1.bf16.msra.mxu0 %v362
    %382 = vmatprep.subr.bf16.mxu0 0
    %383 = vmatpush1.bf16.msra.mxu0 %v361
    %384 = vmatprep.subr.bf16.mxu0 0
    %385 = vmatpush1.bf16.msra.mxu0 %v360
    %386 = vmatprep.subr.bf16.mxu0 0
    %387 = vmatpush1.bf16.msra.mxu0 %v359
    %388 = vmatprep.subr.bf16.mxu0 0
    %389 = vmatpush1.bf16.msra.mxu0 %v358
    %390 = vmatprep.subr.bf16.mxu0 0
    %391 = vmatpush2.bf16.msra.mxu0 0
    %392 = vmatprep.subr.bf16.mxu0 0
    %393 = vmatpush2.bf16.msra.mxu0 0
    %394 = vmatprep.subr.bf16.mxu0 0
    %395 = vmatpush2.bf16.msra.mxu0 0
    %396 = vmatprep.subr.bf16.mxu0 0
    %397 = vmatpush2.bf16.msra.mxu0 0
    %398 = vmatprep.subr.bf16.mxu0 0
    %399 = vmatpush2.bf16.msra.mxu0 0
    %400 = vmatprep.subr.bf16.mxu0 0
    %401 = vmatpush2.bf16.msra.mxu0 0
    %402 = vmatprep.subr.bf16.mxu0 0
    %403 = vmatpush2.bf16.msra.mxu0 0
    %404 = vmatprep.subr.bf16.mxu0 0
    %405 = vmatpush2.bf16.msra.mxu0 0
    %406 = vmatprep.mubr.bf16.mxu0 0
    %407 = vmatmul.mubr.bf16.gmra.mxu0 %v302
    %v408 = vpop.f32.mrf.mxu0
    %v409 = vadd.f32 %v324, %v408
    %v410 = vpop.f32.mrf.mxu0
    %v411 = vpop.f32.mrf.mxu0
    %v412 = vadd.f32 %v324, %v411
    %v413 = vpop.f32.mrf.mxu0
    %414 = vdwg.mxu0
    %v415 = vmax.f32 %v409, 0.0
    %v416 = vmax.f32 %v412, 0.0
    %v417 = vpack.c.bf16 %v416, %v415
    %v419 = vunpack.c.l.b16 %v417
    %v420 = vunpack.c.h.b16 %v417
    %v421 = vpack.c.b16 %v419, %v419
    %v422 = vpack.c.b16 %v420, %v420
    %425 = vst [vmem:[#allocation11] sm:$0xf] %v421
    %426 = vst [vmem:[#allocation11 + $0x4] sm:$0xf] %v422
    %v427 = vld [vmem:[%s1] sm:$0xff]
    %v428 = vld [vmem:[%s1 + $0x8] sm:$0xff]
    %v429 = vlaneseq
    %v430 = vand.u32 %v429, 127
    %431 = vset.pattern.permute.xlu0 0
    %432 = vperm.xlu0 %431, %v427
    %v433 = vpop.permute.xlu0 %432
    %434 = vset.pattern.permute.xlu0 0
    %435 = vperm.xlu0 %434, %v428
    %v436 = vpop.permute.xlu0 %435
    %vm437 = vcmp.eq.s32.totalorder %v433, %v430
    %vm438 = vcmp.eq.s32.totalorder %v436, %v430
    %v439 = vsel %vm437, 1, 0
    %v440 = vsel %vm438, 1, 0
    %v441 = vcvt.s32.f32 %v439
    %v442 = vcvt.s32.f32 %v440
    %v443 = vpack.c.bf16 %v442, %v441
    %v444 = vld [vmem:[#allocation2] sm:$0xf]
    %v445 = vld [vmem:[#allocation2 + $0x4] sm:$0xf]
    %v446 = vld [vmem:[#allocation2 + $0x8] sm:$0xf]
    %v447 = vld [vmem:[#allocation2 + $0xc] sm:$0xf]
    %v448 = vld [vmem:[#allocation2 + $0x10] sm:$0xf]
    %v449 = vld [vmem:[#allocation2 + $0x14] sm:$0xf]
    %v450 = vld [vmem:[#allocation2 + $0x18] sm:$0xf]
    %v451 = vld [vmem:[#allocation2 + $0x1c] sm:$0xf]
    %v452 = vld [vmem:[#allocation2 + $0x20] sm:$0xf]
    %v453 = vld [vmem:[#allocation2 + $0x24] sm:$0xf]
    %v454 = vld [vmem:[#allocation2 + $0x28] sm:$0xf]
    %v455 = vld [vmem:[#allocation2 + $0x2c] sm:$0xf]
    %v456 = vld [vmem:[#allocation2 + $0x30] sm:$0xf]
    %v457 = vld [vmem:[#allocation2 + $0x34] sm:$0xf]
    %v458 = vld [vmem:[#allocation2 + $0x38] sm:$0xf]
    %v459 = vld [vmem:[#allocation2 + $0x3c] sm:$0xf]
    %v476 = vunpack.c.l.b16 %v444
    %v477 = vunpack.c.l.b16 %v445
    %v478 = vunpack.c.l.b16 %v446
    %v479 = vunpack.c.l.b16 %v447
    %v480 = vunpack.c.l.b16 %v448
    %v481 = vunpack.c.l.b16 %v449
    %v482 = vunpack.c.l.b16 %v450
    %v483 = vunpack.c.l.b16 %v451
    %v484 = vunpack.c.l.b16 %v452
    %v485 = vunpack.c.l.b16 %v453
    %v486 = vunpack.c.l.b16 %v454
    %v487 = vunpack.c.l.b16 %v455
    %v488 = vunpack.c.l.b16 %v456
    %v489 = vunpack.c.l.b16 %v457
    %v490 = vunpack.c.l.b16 %v458
    %v491 = vunpack.c.l.b16 %v459
    %v492 = vpack.c.b16 %v477, %v476
    %v493 = vpack.c.b16 %v479, %v478
    %v494 = vpack.c.b16 %v481, %v480
    %v495 = vpack.c.b16 %v483, %v482
    %v496 = vpack.c.b16 %v485, %v484
    %v497 = vpack.c.b16 %v487, %v486
    %v498 = vpack.c.b16 %v489, %v488
    %v499 = vpack.c.b16 %v491, %v490
    %508 = vmatprep.subr.bf16.mxu0 0
    %509 = vmatpush1.bf16.msra.mxu0 %v499
    %510 = vmatprep.subr.bf16.mxu0 0
    %511 = vmatpush1.bf16.msra.mxu0 %v498
    %512 = vmatprep.subr.bf16.mxu0 0
    %513 = vmatpush1.bf16.msra.mxu0 %v497
    %514 = vmatprep.subr.bf16.mxu0 0
    %515 = vmatpush1.bf16.msra.mxu0 %v496
    %516 = vmatprep.subr.bf16.mxu0 0
    %517 = vmatpush1.bf16.msra.mxu0 %v495
    %518 = vmatprep.subr.bf16.mxu0 0
    %519 = vmatpush1.bf16.msra.mxu0 %v494
    %520 = vmatprep.subr.bf16.mxu0 0
    %521 = vmatpush1.bf16.msra.mxu0 %v493
    %522 = vmatprep.subr.bf16.mxu0 0
    %523 = vmatpush1.bf16.msra.mxu0 %v492
    %524 = vmatprep.subr.bf16.mxu0 0
    %525 = vmatpush2.bf16.msra.mxu0 0
    %526 = vmatprep.subr.bf16.mxu0 0
    %527 = vmatpush2.bf16.msra.mxu0 0
    %528 = vmatprep.subr.bf16.mxu0 0
    %529 = vmatpush2.bf16.msra.mxu0 0
    %530 = vmatprep.subr.bf16.mxu0 0
    %531 = vmatpush2.bf16.msra.mxu0 0
    %532 = vmatprep.subr.bf16.mxu0 0
    %533 = vmatpush2.bf16.msra.mxu0 0
    %534 = vmatprep.subr.bf16.mxu0 0
    %535 = vmatpush2.bf16.msra.mxu0 0
    %536 = vmatprep.subr.bf16.mxu0 0
    %537 = vmatpush2.bf16.msra.mxu0 0
    %538 = vmatprep.subr.bf16.mxu0 0
    %539 = vmatpush2.bf16.msra.mxu0 0
    %540 = vmatprep.mubr.bf16.mxu0 0
    %541 = vmatmul.mubr.bf16.gmra.mxu0 %v443
    %v542 = vpop.f32.mrf.mxu0
    %v543 = vadd.f32 0.0, %v542
    %v544 = vpop.f32.mrf.mxu0
    %v545 = vpop.f32.mrf.mxu0
    %v546 = vadd.f32 0.0, %v545
    %v547 = vpop.f32.mrf.mxu0
    %548 = vdwg.mxu0
    %v549 = vadd.f32 %v415, %v543
    %v550 = vadd.f32 %v416, %v546
    %v551 = vpack.c.bf16 %v550, %v549
    %v552 = vld [vmem:[#allocation8] sm:$0xf]
    %v553 = vld [vmem:[#allocation8 + $0x4] sm:$0xf]
    %v554 = vld [vmem:[#allocation8 + $0x8] sm:$0xf]
    %v555 = vld [vmem:[#allocation8 + $0xc] sm:$0xf]
    %v556 = vld [vmem:[#allocation8 + $0x10] sm:$0xf]
    %v557 = vld [vmem:[#allocation8 + $0x14] sm:$0xf]
    %v558 = vld [vmem:[#allocation8 + $0x18] sm:$0xf]
    %v559 = vld [vmem:[#allocation8 + $0x1c] sm:$0xf]
    %v560 = vld [vmem:[#allocation8 + $0x20] sm:$0xf]
    %v561 = vld [vmem:[#allocation8 + $0x24] sm:$0xf]
    %v562 = vld [vmem:[#allocation8 + $0x28] sm:$0xf]
    %v563 = vld [vmem:[#allocation8 + $0x2c] sm:$0xf]
    %v564 = vld [vmem:[#allocation8 + $0x30] sm:$0xf]
    %v565 = vld [vmem:[#allocation8 + $0x34] sm:$0xf]
    %v566 = vld [vmem:[#allocation8 + $0x38] sm:$0xf]
    %v567 = vld [vmem:[#allocation8 + $0x3c] sm:$0xf]
    %v568 = vld [vmem:[%s8] sm:$0x1]
    %v570 = vlaneseq
    %v571 = vshrl.u32 %v570, 7
    %v572 = vsub.s32 0, %v571
    %v573 = vrot.slane %v568, %v572
    %v591 = vunpack.c.l.b16 %v552
    %v592 = vunpack.c.l.b16 %v553
    %v593 = vunpack.c.l.b16 %v554
    %v594 = vunpack.c.l.b16 %v555
    %v595 = vunpack.c.l.b16 %v556
    %v596 = vunpack.c.l.b16 %v557
    %v597 = vunpack.c.l.b16 %v558
    %v598 = vunpack.c.l.b16 %v559
    %v599 = vunpack.c.l.b16 %v560
    %v600 = vunpack.c.l.b16 %v561
    %v601 = vunpack.c.l.b16 %v562
    %v602 = vunpack.c.l.b16 %v563
    %v603 = vunpack.c.l.b16 %v564
    %v604 = vunpack.c.l.b16 %v565
    %v605 = vunpack.c.l.b16 %v566
    %v606 = vunpack.c.l.b16 %v567
    %v607 = vpack.c.b16 %v592, %v591
    %v608 = vpack.c.b16 %v594, %v593
    %v609 = vpack.c.b16 %v596, %v595
    %v610 = vpack.c.b16 %v598, %v597
    %v611 = vpack.c.b16 %v600, %v599
    %v612 = vpack.c.b16 %v602, %v601
    %v613 = vpack.c.b16 %v604, %v603
    %v614 = vpack.c.b16 %v606, %v605
    %623 = vmatprep.subr.bf16.mxu0 0
    %624 = vmatpush1.bf16.msra.mxu0 %v614
    %625 = vmatprep.subr.bf16.mxu0 0
    %626 = vmatpush1.bf16.msra.mxu0 %v613
    %627 = vmatprep.subr.bf16.mxu0 0
    %628 = vmatpush1.bf16.msra.mxu0 %v612
    %629 = vmatprep.subr.bf16.mxu0 0
    %630 = vmatpush1.bf16.msra.mxu0 %v611
    %631 = vmatprep.subr.bf16.mxu0 0
    %632 = vmatpush1.bf16.msra.mxu0 %v610
    %633 = vmatprep.subr.bf16.mxu0 0
    %634 = vmatpush1.bf16.msra.mxu0 %v609
    %635 = vmatprep.subr.bf16.mxu0 0
    %636 = vmatpush1.bf16.msra.mxu0 %v608
    %637 = vmatprep.subr.bf16.mxu0 0
    %638 = vmatpush1.bf16.msra.mxu0 %v607
    %639 = vmatprep.subr.bf16.mxu0 0
    %640 = vmatpush2.bf16.msra.mxu0 0
    %641 = vmatprep.subr.bf16.mxu0 0
    %642 = vmatpush2.bf16.msra.mxu0 0
    %643 = vmatprep.subr.bf16.mxu0 0
    %644 = vmatpush2.bf16.msra.mxu0 0
    %645 = vmatprep.subr.bf16.mxu0 0
    %646 = vmatpush2.bf16.msra.mxu0 0
    %647 = vmatprep.subr.bf16.mxu0 0
    %648 = vmatpush2.bf16.msra.mxu0 0
    %649 = vmatprep.subr.bf16.mxu0 0
    %650 = vmatpush2.bf16.msra.mxu0 0
    %651 = vmatprep.subr.bf16.mxu0 0
    %652 = vmatpush2.bf16.msra.mxu0 0
    %653 = vmatprep.subr.bf16.mxu0 0
    %654 = vmatpush2.bf16.msra.mxu0 0
    %655 = vmatprep.mubr.bf16.mxu0 0
    %656 = vmatmul.mubr.bf16.gmra.mxu0 %v551
    %v657 = vpop.f32.mrf.mxu0
    %v658 = vadd.f32 %v573, %v657
    %v659 = vpop.f32.mrf.mxu0
    %v660 = vpop.f32.mrf.mxu0
    %v661 = vadd.f32 %v573, %v660
    %v662 = vpop.f32.mrf.mxu0
    %663 = vdwg.mxu0
    %v664 = vmax.f32 %v658, 0.0
    %v665 = vmax.f32 %v661, 0.0
    %v666 = vpack.c.bf16 %v665, %v664
    %v668 = vunpack.c.l.b16 %v666
    %v669 = vunpack.c.h.b16 %v666
    %v670 = vpack.c.b16 %v668, %v668
    %v671 = vpack.c.b16 %v669, %v669
    %674 = vst [vmem:[#allocation12] sm:$0xf] %v670
    %675 = vst [vmem:[#allocation12 + $0x4] sm:$0xf] %v671
    %v676 = vld [vmem:[#allocation10] sm:$0xf]
    %v677 = vld [vmem:[#allocation10 + $0x4] sm:$0xf]
    %v678 = vld [vmem:[#allocation10 + $0x8] sm:$0xf]
    %v679 = vld [vmem:[#allocation10 + $0xc] sm:$0xf]
    %v680 = vld [vmem:[#allocation10 + $0x10] sm:$0xf]
    %v681 = vld [vmem:[#allocation10 + $0x14] sm:$0xf]
    %v682 = vld [vmem:[#allocation10 + $0x18] sm:$0xf]
    %v683 = vld [vmem:[#allocation10 + $0x1c] sm:$0xf]
    %v684 = vld [vmem:[#allocation10 + $0x20] sm:$0xf]
    %v685 = vld [vmem:[#allocation10 + $0x24] sm:$0xf]
    %v686 = vld [vmem:[#allocation10 + $0x28] sm:$0xf]
    %v687 = vld [vmem:[#allocation10 + $0x2c] sm:$0xf]
    %v688 = vld [vmem:[#allocation10 + $0x30] sm:$0xf]
    %v689 = vld [vmem:[#allocation10 + $0x34] sm:$0xf]
    %v690 = vld [vmem:[#allocation10 + $0x38] sm:$0xf]
    %v691 = vld [vmem:[#allocation10 + $0x3c] sm:$0xf]
    %v692 = vld [vmem:[%s10] sm:$0x1]
    %v694 = vlaneseq
    %v695 = vshrl.u32 %v694, 7
    %v696 = vsub.s32 0, %v695
    %v697 = vrot.slane %v692, %v696
    %v715 = vunpack.c.l.b16 %v676
    %v716 = vunpack.c.l.b16 %v677
    %v717 = vunpack.c.l.b16 %v678
    %v718 = vunpack.c.l.b16 %v679
    %v719 = vunpack.c.l.b16 %v680
    %v720 = vunpack.c.l.b16 %v681
    %v721 = vunpack.c.l.b16 %v682
    %v722 = vunpack.c.l.b16 %v683
    %v723 = vunpack.c.l.b16 %v684
    %v724 = vunpack.c.l.b16 %v685
    %v725 = vunpack.c.l.b16 %v686
    %v726 = vunpack.c.l.b16 %v687
    %v727 = vunpack.c.l.b16 %v688
    %v728 = vunpack.c.l.b16 %v689
    %v729 = vunpack.c.l.b16 %v690
    %v730 = vunpack.c.l.b16 %v691
    %v731 = vpack.c.b16 %v716, %v715
    %v732 = vpack.c.b16 %v718, %v717
    %v733 = vpack.c.b16 %v720, %v719
    %v734 = vpack.c.b16 %v722, %v721
    %v735 = vpack.c.b16 %v724, %v723
    %v736 = vpack.c.b16 %v726, %v725
    %v737 = vpack.c.b16 %v728, %v727
    %v738 = vpack.c.b16 %v730, %v729
    %747 = vmatprep.subr.bf16.mxu0 0
    %748 = vmatpush1.bf16.msra.mxu0 %v738
    %749 = vmatprep.subr.bf16.mxu0 0
    %750 = vmatpush1.bf16.msra.mxu0 %v737
    %751 = vmatprep.subr.bf16.mxu0 0
    %752 = vmatpush1.bf16.msra.mxu0 %v736
    %753 = vmatprep.subr.bf16.mxu0 0
    %754 = vmatpush1.bf16.msra.mxu0 %v735
    %755 = vmatprep.subr.bf16.mxu0 0
    %756 = vmatpush1.bf16.msra.mxu0 %v734
    %757 = vmatprep.subr.bf16.mxu0 0
    %758 = vmatpush1.bf16.msra.mxu0 %v733
    %759 = vmatprep.subr.bf16.mxu0 0
    %760 = vmatpush1.bf16.msra.mxu0 %v732
    %761 = vmatprep.subr.bf16.mxu0 0
    %762 = vmatpush1.bf16.msra.mxu0 %v731
    %763 = vmatprep.subr.bf16.mxu0 0
    %764 = vmatpush2.bf16.msra.mxu0 0
    %765 = vmatprep.subr.bf16.mxu0 0
    %766 = vmatpush2.bf16.msra.mxu0 0
    %767 = vmatprep.subr.bf16.mxu0 0
    %768 = vmatpush2.bf16.msra.mxu0 0
    %769 = vmatprep.subr.bf16.mxu0 0
    %770 = vmatpush2.bf16.msra.mxu0 0
    %771 = vmatprep.subr.bf16.mxu0 0
    %772 = vmatpush2.bf16.msra.mxu0 0
    %773 = vmatprep.subr.bf16.mxu0 0
    %774 = vmatpush2.bf16.msra.mxu0 0
    %775 = vmatprep.subr.bf16.mxu0 0
    %776 = vmatpush2.bf16.msra.mxu0 0
    %777 = vmatprep.subr.bf16.mxu0 0
    %778 = vmatpush2.bf16.msra.mxu0 0
    %779 = vmatprep.mubr.bf16.mxu0 0
    %780 = vmatmul.mubr.bf16.gmra.mxu0 %v666
    %v781 = vpop.f32.mrf.mxu0
    %v782 = vadd.f32 %v697, %v781
    %v783 = vpop.f32.mrf.mxu0
    %v784 = vpop.f32.mrf.mxu0
    %v785 = vadd.f32 %v697, %v784
    %v786 = vpop.f32.mrf.mxu0
    %787 = vdwg.mxu0
    %788 = vst [vmem:[#allocation14] sm:$0xff] %v782
    %789 = vst [vmem:[#allocation14 + $0x8] sm:$0xff] %v785
    // Predicated region
    $region66: #{tpu_custom_call.1} parent=1 // pred_check
      _
    $region67: #{tpu_custom_call.1} parent=1 // pred_check_branch
      %791 = sbr.rel (0) target = $region69
    $region68: #{tpu_custom_call.1} parent=1 // pred_region
      %s793 = ssub.s32 128, 128
      %794 = vsyncadd [#allocation4], %s793
      %s795 = sshll.u32 [#allocation11], 4
      %s796 = int_to_ptr.vmem [resolvable:$true] %s795
      %801 = dma.vmem_to_hbm [thread:$0]  %s796, 128, %s11, [#allocation4], 64, 64, 4
    $region69: #{tpu_custom_call.1} parent=1 // pred_fallthru
      _
    // Predicated region
    $region70: #{tpu_custom_call.1} parent=1 // pred_check
      _
    $region71: #{tpu_custom_call.1} parent=1 // pred_check_branch
      %803 = sbr.rel (0) target = $region73
    $region72: #{tpu_custom_call.1} parent=1 // pred_region
      %s805 = ssub.s32 128, 128
      %806 = vsyncadd [#allocation13], %s805
      %s807 = sshll.u32 [#allocation12], 4
      %s808 = int_to_ptr.vmem [resolvable:$true] %s807
      %813 = dma.vmem_to_hbm [thread:$0]  %s808, 128, %s12, [#allocation13], 64, 64, 4
    $region73: #{tpu_custom_call.1} parent=1 // pred_fallthru
      _
    // Predicated region
    $region74: #{tpu_custom_call.1} parent=1 // pred_check
      _
    $region75: #{tpu_custom_call.1} parent=1 // pred_check_branch
      %815 = sbr.rel (0) target = $region77
    $region76: #{tpu_custom_call.1} parent=1 // pred_region
      %s817 = ssub.s32 256, 256
      %818 = vsyncadd [#allocation13], %s817
      %s819 = sshll.u32 [#allocation14], 4
      %s820 = int_to_ptr.vmem [resolvable:$true] %s819
      %825 = dma.vmem_to_hbm [thread:$0]  %s820, 256, %s13, [#allocation13], 128, 128, 8
    $region77: #{tpu_custom_call.1} parent=1 // pred_fallthru
      _
    // Predicated region
    $region78: #{tpu_custom_call.1} parent=1 // pred_check
      _
    $region79: #{tpu_custom_call.1} parent=1 // pred_check_branch
      %827 = sbr.rel (0) target = $region81
    $region80: #{tpu_custom_call.1} parent=1 // pred_region
      %828 = dma.done [#allocation4], 128
    $region81: #{tpu_custom_call.1} parent=1 // pred_fallthru
      _
    // Predicated region
    $region82: #{tpu_custom_call.1} parent=1 // pred_check
      _
    $region83: #{tpu_custom_call.1} parent=1 // pred_check_branch
      %830 = sbr.rel (0) target = $region85
    $region84: #{tpu_custom_call.1} parent=1 // pred_region
      %831 = dma.done [#allocation13], 128
    $region85: #{tpu_custom_call.1} parent=1 // pred_fallthru
      _
    // Predicated region
    $region86: #{tpu_custom_call.1} parent=1 // pred_check
      _
    $region87: #{tpu_custom_call.1} parent=1 // pred_check_branch
      %833 = sbr.rel (0) target = $region89
    $region88: #{tpu_custom_call.1} parent=1 // pred_region
      %834 = dma.done [#allocation13], 256
    $region89: #{tpu_custom_call.1} parent=1 // pred_fallthru
      _
    %835 = vsyncpa [#allocation3], 1
    %836 = vsyncpa [#allocation6], 1
    %837 = vsyncpa [#allocation9], 1
    %838 = vsyncpa [#allocation4], 1
    %839 = vsyncpa [#allocation13], 1

</llo_original>
